<compile_context>
chip_gen: v6e
topology: v6e:2x2x1
jax: 0.10.0
libtpu: 0.0.40
codegen_flags: <defaults>
</compile_context>

<pallas_src>
import jax
import jax.numpy as jnp
import numpy as np
from jax.experimental import pallas as pl
from jax.experimental.pallas import tpu as pltpu


def make_divisible(value, divisor, min_value=None, rounding_down_protect=True):
    if min_value is None:
        min_value = divisor
    new_value = max(min_value, int(value + divisor / 2) // divisor * divisor)
    if rounding_down_protect and new_value < 0.9 * value:
        new_value += divisor
    return int(new_value)


LANES = 128


def _ibn_kernel(x_ref, w1_ref, b1_ref, w2_ref, b2_ref, wp_ref, bias_ref, o_ref):
    """SE + folded 1x1 projection/BatchNorm on a pixels-on-lanes (Cin, T) -> (Cout, T) tile."""
    x = x_ref[0].astype(jnp.float32)                       # (Cin, T)

    # --- SqueezeExcitation ---------------------------------------------------
    # torch.mean(inputs, dim=1, keepdim=True): channel mean (sublane reduce).
    # Skip the reduce entirely when Cin == 1 (the common / demo case).
    if x.shape[0] == 1:
        m = x                                              # (1, T)
    else:
        m = jnp.mean(x, axis=0, keepdims=True)             # (1, T)

    # squeeze_conv: 1x1 conv (1 -> mid) + bias + ReLU.  Per-lane VPU FMAs with the
    # (mid, 1) weight column broadcast along lanes.
    s1 = jnp.maximum(w1_ref[...] * m + b1_ref[...], 0.0)   # (mid, T)

    # squeeze_expand: 1x1 conv (mid -> E) + bias + Sigmoid.  K = mid is tiny (4), so
    # use unrolled VPU broadcast FMAs instead of a padded MXU matmul.
    w2 = w2_ref[...]                                       # (E, mid)
    z = b2_ref[...] + w2[:, 0:1] * s1[0:1, :]
    for k in range(1, w2.shape[1]):
        z = z + w2[:, k:k + 1] * s1[k:k + 1, :]
    s2 = jax.nn.sigmoid(z)                                 # (E, T)  (EUP)

    se = m * s2                                            # (1,T)*(E,T) -> (E, T)

    # --- projection 1x1 conv (E -> Cout), BatchNorm folded (scale in wp, bias added)
    wp = wp_ref[...]                                       # (Cout, E)
    y = bias_ref[...] + wp[:, 0:1] * se[0:1, :]
    for k in range(1, wp.shape[1]):
        y = y + wp[:, k:k + 1] * se[k:k + 1, :]
    o_ref[0] = y.astype(o_ref.dtype)                       # lane-dense store


def _choose_hw_tiling(hw, cin, cout, dtype_bytes=4, target_bytes=4 << 20):
    """Pick a lane-axis tile (multiple of 128) and the padded H*W extent.

    Budgets ~target_bytes for the double-buffered input+output tiles so the choice
    stays comfortably inside VMEM on all of v5e/v6e/v7x (v7x has only 64 MiB)."""
    hw_pad = -(-hw // LANES) * LANES
    per_px = 2 * (cin + cout) * dtype_bytes          # double-buffered in + out bytes/pixel
    max_px = max(LANES, (target_bytes // per_px) // LANES * LANES)
    if hw_pad <= max_px:
        return hw_pad, hw_pad                        # one spatial tile, no extra padding
    tile = max_px
    hw_pad = -(-hw_pad // tile) * tile
    return tile, hw_pad


def inverted_bottleneck_block(x_nchw, params):
    """params = (w1, b1, w2, b2, wp, bn_scale, bn_bias) in 'natural' row orientation."""
    w1, b1, w2, b2, wp, bn_scale, bn_bias = params
    N, Cin, H, W = x_nchw.shape
    Cout = wp.shape[1]
    assert w1.shape[0] == 1, "reference SE applies its conv to the 1-channel mean map"

    HW = H * W
    tile, hw_pad = _choose_hw_tiling(HW, Cin, Cout)

    # NCHW is already channels-on-sublanes / pixels-on-lanes: reshape is free.
    x3d = x_nchw.reshape(N, Cin, HW)
    if hw_pad != HW:  # only pad when H*W is not already a multiple of 128
        x3d = jnp.pad(x3d, ((0, 0), (0, 0), (0, hw_pad - HW)))

    f32 = jnp.float32
    w1c = jnp.transpose(w1).astype(f32)                                # (mid, 1)
    b1c = jnp.transpose(b1).astype(f32)                                # (mid, 1)
    w2c = jnp.transpose(w2).astype(f32)                                # (E, mid)
    b2c = jnp.transpose(b2).astype(f32)                                # (E, 1)
    wpc = (jnp.transpose(wp) * jnp.transpose(bn_scale)).astype(f32)    # (Cout, E), BN scale folded
    biasc = jnp.transpose(bn_bias).astype(f32)                         # (Cout, 1)

    grid = (N, hw_pad // tile)
    const = lambda a: pl.BlockSpec(a.shape, lambda n, p: (0, 0))

    out3d = pl.pallas_call(
        _ibn_kernel,
        out_shape=jax.ShapeDtypeStruct((N, Cout, hw_pad), x_nchw.dtype),
        grid=grid,
        in_specs=[
            pl.BlockSpec((1, Cin, tile), lambda n, p: (n, 0, p)),
            const(w1c), const(b1c), const(w2c), const(b2c), const(wpc), const(biasc),
        ],
        out_specs=pl.BlockSpec((1, Cout, tile), lambda n, p: (n, 0, p)),
        compiler_params=pltpu.CompilerParams(
            dimension_semantics=("parallel", "parallel")),
    )(x3d, w1c, b1c, w2c, b2c, wpc, biasc)

    if hw_pad != HW:
        out3d = out3d[:, :, :HW]
    return out3d.reshape(N, Cout, H, W)


def ref_forward(x, w1, b1, w2, b2, wp, scale, bias):
    """Pure-JAX reference (NCHW), same math as the PyTorch module in eval mode."""
    m = jnp.mean(x, axis=1, keepdims=True)                             # (N,1,H,W)
    s1 = jnp.einsum("nchw,cd->ndhw", m, w1) + b1[0][None, :, None, None]
    s1 = jnp.maximum(s1, 0.0)
    s2 = jax.nn.sigmoid(jnp.einsum("nchw,cd->ndhw", s1, w2)
                        + b2[0][None, :, None, None])
    se = m * s2
    y = jnp.einsum("nchw,cd->ndhw", se, wp)
    return y * scale[0][None, :, None, None] + bias[0][None, :, None, None]


if __name__ == "__main__":
    # Module hyper-params (defaults of InvertedBottleneckBlock).
    in_channels = 1            # required: SE consumes the 1-channel mean map (see header)
    out_channels = 8
    expand_ratio = 4
    division = 1
    squeeze_ratio = 0.25
    bn_eps = 1e-6              # normal_config['eps']

    expand_channels = make_divisible(in_channels * expand_ratio, division)          # 4
    se_in = in_channels        # expand_se_in_filters=False
    mid = make_divisible(max(1, se_in * squeeze_ratio), divisor=4)                  # 4

    # Deterministic synthetic parameters.
    key = jax.random.PRNGKey(0)
    ks = jax.random.split(key, 12)
    f32 = jnp.float32
    w1 = (0.3 * jax.random.normal(ks[0], (se_in, mid))).astype(f32)           # (1, mid)
    b1 = (0.1 * jax.random.normal(ks[1], (1, mid))).astype(f32)
    w2 = (0.3 * jax.random.normal(ks[2], (mid, expand_channels))).astype(f32)
    b2 = (0.1 * jax.random.normal(ks[3], (1, expand_channels))).astype(f32)
    wp = (0.3 * jax.random.normal(ks[4], (expand_channels, out_channels))).astype(f32)
    gamma = (1.0 + 0.1 * jax.random.normal(ks[5], (out_channels,))).astype(f32)
    beta = (0.1 * jax.random.normal(ks[6], (out_channels,))).astype(f32)
    run_mean = (0.05 * jax.random.normal(ks[7], (out_channels,))).astype(f32)
    run_var = (1.0 + 0.1 * jnp.abs(jax.random.normal(ks[8], (out_channels,)))).astype(f32)

    # Fold eval-mode BatchNorm2d into a per-channel scale/bias.
    bn_scale = (gamma / jnp.sqrt(run_var + bn_eps)).reshape(1, out_channels)
    bn_bias = (beta - run_mean * gamma / jnp.sqrt(run_var + bn_eps)).reshape(1, out_channels)

    params = (w1, b1, w2, b2, wp, bn_scale, bn_bias)

    # Input (NCHW, as in PyTorch).
    x = jax.random.normal(ks[9], (2, in_channels, 16, 16), dtype=f32)

    out = inverted_bottleneck_block(x, params)
    out = jax.block_until_ready(out)

    ref = jax.block_until_ready(ref_forward(x, *params))
    np.testing.assert_allclose(np.asarray(out), np.asarray(ref), rtol=1e-4, atol=1e-4)

    # TODO(synk): StochasticDepth / residual branch are inactive under the default
    # config (use_residule=False, drop_rate=0, eval mode) and thus not emitted.
    print("KERNEL_OK")
</pallas_src>

<mosaic_0001>
module attributes {stable_mosaic.version = 11 : i64} {
  func.func @_ibn_kernel(%arg0: i32, %arg1: i32, %arg2: memref<1x1x256xf32, #tpu.memory_space<vmem>>, %arg3: memref<4x1xf32, #tpu.memory_space<vmem>>, %arg4: memref<4x1xf32, #tpu.memory_space<vmem>>, %arg5: memref<4x4xf32, #tpu.memory_space<vmem>>, %arg6: memref<4x1xf32, #tpu.memory_space<vmem>>, %arg7: memref<8x4xf32, #tpu.memory_space<vmem>>, %arg8: memref<8x1xf32, #tpu.memory_space<vmem>>, %arg9: memref<1x8x256xf32, #tpu.memory_space<vmem>>) attributes {dimension_semantics = [#tpu.dimension_semantics<parallel>, #tpu.dimension_semantics<parallel>], iteration_bounds = array<i64: 2, 1>, scalar_prefetch = 0 : i64, scratch_operands = 0 : i64, tpu.core_type = #tpu.core_type<tc>, window_params = [{transform_indices = @transform_0, window_bounds = array<i64: 1, 1, 256>}, {pipeline_mode = #tpu.pipeline_mode<synchronous>, transform_indices = @transform_1, window_bounds = array<i64: 4, 1>}, {pipeline_mode = #tpu.pipeline_mode<synchronous>, transform_indices = @transform_2, window_bounds = array<i64: 4, 1>}, {pipeline_mode = #tpu.pipeline_mode<synchronous>, transform_indices = @transform_3, window_bounds = array<i64: 4, 4>}, {pipeline_mode = #tpu.pipeline_mode<synchronous>, transform_indices = @transform_4, window_bounds = array<i64: 4, 1>}, {pipeline_mode = #tpu.pipeline_mode<synchronous>, transform_indices = @transform_5, window_bounds = array<i64: 8, 4>}, {pipeline_mode = #tpu.pipeline_mode<synchronous>, transform_indices = @transform_6, window_bounds = array<i64: 8, 1>}, {transform_indices = @transform_7, window_bounds = array<i64: 1, 8, 256>}]} {
    %c0 = arith.constant 0 : index
    %c0_0 = arith.constant 0 : index
    %c0_1 = arith.constant 0 : index
    %0 = vector.load %arg2[%c0, %c0_0, %c0_1] : memref<1x1x256xf32, #tpu.memory_space<vmem>>, vector<1x1x256xf32>
    %1 = vector.shape_cast %0 : vector<1x1x256xf32> to vector<1x256xf32>
    %c0_2 = arith.constant 0 : index
    %c0_3 = arith.constant 0 : index
    %2 = vector.load %arg3[%c0_2, %c0_3] : memref<4x1xf32, #tpu.memory_space<vmem>>, vector<4x1xf32>
    %3 = vector.broadcast %2 : vector<4x1xf32> to vector<4x256xf32>
    %4 = vector.broadcast %1 : vector<1x256xf32> to vector<4x256xf32>
    %5 = arith.mulf %3, %4 : vector<4x256xf32>
    %c0_4 = arith.constant 0 : index
    %c0_5 = arith.constant 0 : index
    %6 = vector.load %arg4[%c0_4, %c0_5] : memref<4x1xf32, #tpu.memory_space<vmem>>, vector<4x1xf32>
    %7 = vector.broadcast %6 : vector<4x1xf32> to vector<4x256xf32>
    %8 = arith.addf %5, %7 : vector<4x256xf32>
    %cst = arith.constant 0.000000e+00 : f32
    %9 = vector.broadcast %cst : f32 to vector<4x256xf32>
    %10 = arith.maximumf %8, %9 : vector<4x256xf32>
    %c0_6 = arith.constant 0 : index
    %c0_7 = arith.constant 0 : index
    %11 = vector.load %arg5[%c0_6, %c0_7] : memref<4x4xf32, #tpu.memory_space<vmem>>, vector<4x4xf32>
    %c0_8 = arith.constant 0 : index
    %c0_9 = arith.constant 0 : index
    %12 = vector.load %arg6[%c0_8, %c0_9] : memref<4x1xf32, #tpu.memory_space<vmem>>, vector<4x1xf32>
    %13 = vector.extract_strided_slice %11 {offsets = [0, 0], sizes = [4, 1], strides = [1, 1]} : vector<4x4xf32> to vector<4x1xf32>
    %14 = vector.extract_strided_slice %10 {offsets = [0, 0], sizes = [1, 256], strides = [1, 1]} : vector<4x256xf32> to vector<1x256xf32>
    %15 = vector.broadcast %13 : vector<4x1xf32> to vector<4x256xf32>
    %16 = vector.broadcast %14 : vector<1x256xf32> to vector<4x256xf32>
    %17 = arith.mulf %15, %16 : vector<4x256xf32>
    %18 = vector.broadcast %12 : vector<4x1xf32> to vector<4x256xf32>
    %19 = arith.addf %18, %17 : vector<4x256xf32>
    %20 = vector.extract_strided_slice %11 {offsets = [0, 1], sizes = [4, 1], strides = [1, 1]} : vector<4x4xf32> to vector<4x1xf32>
    %21 = vector.extract_strided_slice %10 {offsets = [1, 0], sizes = [1, 256], strides = [1, 1]} : vector<4x256xf32> to vector<1x256xf32>
    %22 = vector.broadcast %20 : vector<4x1xf32> to vector<4x256xf32>
    %23 = vector.broadcast %21 : vector<1x256xf32> to vector<4x256xf32>
    %24 = arith.mulf %22, %23 : vector<4x256xf32>
    %25 = arith.addf %19, %24 : vector<4x256xf32>
    %26 = vector.extract_strided_slice %11 {offsets = [0, 2], sizes = [4, 1], strides = [1, 1]} : vector<4x4xf32> to vector<4x1xf32>
    %27 = vector.extract_strided_slice %10 {offsets = [2, 0], sizes = [1, 256], strides = [1, 1]} : vector<4x256xf32> to vector<1x256xf32>
    %28 = vector.broadcast %26 : vector<4x1xf32> to vector<4x256xf32>
    %29 = vector.broadcast %27 : vector<1x256xf32> to vector<4x256xf32>
    %30 = arith.mulf %28, %29 : vector<4x256xf32>
    %31 = arith.addf %25, %30 : vector<4x256xf32>
    %32 = vector.extract_strided_slice %11 {offsets = [0, 3], sizes = [4, 1], strides = [1, 1]} : vector<4x4xf32> to vector<4x1xf32>
    %33 = vector.extract_strided_slice %10 {offsets = [3, 0], sizes = [1, 256], strides = [1, 1]} : vector<4x256xf32> to vector<1x256xf32>
    %34 = vector.broadcast %32 : vector<4x1xf32> to vector<4x256xf32>
    %35 = vector.broadcast %33 : vector<1x256xf32> to vector<4x256xf32>
    %36 = arith.mulf %34, %35 : vector<4x256xf32>
    %37 = arith.addf %31, %36 : vector<4x256xf32>
    %38 = arith.negf %37 : vector<4x256xf32>
    %39 = math.exp %38 : vector<4x256xf32>
    %cst_10 = arith.constant 1.000000e+00 : f32
    %40 = vector.broadcast %cst_10 : f32 to vector<4x256xf32>
    %41 = arith.addf %40, %39 : vector<4x256xf32>
    %42 = arith.divf %40, %41 : vector<4x256xf32>
    %43 = vector.broadcast %1 : vector<1x256xf32> to vector<4x256xf32>
    %44 = arith.mulf %43, %42 : vector<4x256xf32>
    %c0_11 = arith.constant 0 : index
    %c0_12 = arith.constant 0 : index
    %45 = vector.load %arg7[%c0_11, %c0_12] : memref<8x4xf32, #tpu.memory_space<vmem>>, vector<8x4xf32>
    %c0_13 = arith.constant 0 : index
    %c0_14 = arith.constant 0 : index
    %46 = vector.load %arg8[%c0_13, %c0_14] : memref<8x1xf32, #tpu.memory_space<vmem>>, vector<8x1xf32>
    %47 = vector.extract_strided_slice %45 {offsets = [0, 0], sizes = [8, 1], strides = [1, 1]} : vector<8x4xf32> to vector<8x1xf32>
    %48 = vector.extract_strided_slice %44 {offsets = [0, 0], sizes = [1, 256], strides = [1, 1]} : vector<4x256xf32> to vector<1x256xf32>
    %49 = vector.broadcast %47 : vector<8x1xf32> to vector<8x256xf32>
    %50 = vector.broadcast %48 : vector<1x256xf32> to vector<8x256xf32>
    %51 = arith.mulf %49, %50 : vector<8x256xf32>
    %52 = vector.broadcast %46 : vector<8x1xf32> to vector<8x256xf32>
    %53 = arith.addf %52, %51 : vector<8x256xf32>
    %54 = vector.extract_strided_slice %45 {offsets = [0, 1], sizes = [8, 1], strides = [1, 1]} : vector<8x4xf32> to vector<8x1xf32>
    %55 = vector.extract_strided_slice %44 {offsets = [1, 0], sizes = [1, 256], strides = [1, 1]} : vector<4x256xf32> to vector<1x256xf32>
    %56 = vector.broadcast %54 : vector<8x1xf32> to vector<8x256xf32>
    %57 = vector.broadcast %55 : vector<1x256xf32> to vector<8x256xf32>
    %58 = arith.mulf %56, %57 : vector<8x256xf32>
    %59 = arith.addf %53, %58 : vector<8x256xf32>
    %60 = vector.extract_strided_slice %45 {offsets = [0, 2], sizes = [8, 1], strides = [1, 1]} : vector<8x4xf32> to vector<8x1xf32>
    %61 = vector.extract_strided_slice %44 {offsets = [2, 0], sizes = [1, 256], strides = [1, 1]} : vector<4x256xf32> to vector<1x256xf32>
    %62 = vector.broadcast %60 : vector<8x1xf32> to vector<8x256xf32>
    %63 = vector.broadcast %61 : vector<1x256xf32> to vector<8x256xf32>
    %64 = arith.mulf %62, %63 : vector<8x256xf32>
    %65 = arith.addf %59, %64 : vector<8x256xf32>
    %66 = vector.extract_strided_slice %45 {offsets = [0, 3], sizes = [8, 1], strides = [1, 1]} : vector<8x4xf32> to vector<8x1xf32>
    %67 = vector.extract_strided_slice %44 {offsets = [3, 0], sizes = [1, 256], strides = [1, 1]} : vector<4x256xf32> to vector<1x256xf32>
    %68 = vector.broadcast %66 : vector<8x1xf32> to vector<8x256xf32>
    %69 = vector.broadcast %67 : vector<1x256xf32> to vector<8x256xf32>
    %70 = arith.mulf %68, %69 : vector<8x256xf32>
    %71 = arith.addf %65, %70 : vector<8x256xf32>
    %c0_15 = arith.constant 0 : index
    %c0_16 = arith.constant 0 : index
    %c0_17 = arith.constant 0 : index
    %72 = vector.load %arg9[%c0_15, %c0_16, %c0_17] : memref<1x8x256xf32, #tpu.memory_space<vmem>>, vector<1x8x256xf32>
    %73 = vector.shape_cast %72 : vector<1x8x256xf32> to vector<8x256xf32>
    %74 = vector.shape_cast %71 : vector<8x256xf32> to vector<1x8x256xf32>
    tpu.vector_store %arg9[%c0_15, %c0_16, %c0_17], %74 {strides = array<i32>} : memref<1x8x256xf32, #tpu.memory_space<vmem>>, vector<1x8x256xf32>,
    return
  }
  func.func @transform_0(%arg0: i32, %arg1: i32) -> (i32, i32, i32) {
    %c0_i32 = arith.constant 0 : i32
    %c0_i32_0 = arith.constant 0 : i32
    return %arg0, %c0_i32, %arg1 : i32, i32, i32
  }
  func.func @transform_1(%arg0: i32, %arg1: i32) -> (i32, i32) {
    %c0_i32 = arith.constant 0 : i32
    %c0_i32_0 = arith.constant 0 : i32
    %c0_i32_1 = arith.constant 0 : i32
    return %c0_i32, %c0_i32_0 : i32, i32
  }
  func.func @transform_2(%arg0: i32, %arg1: i32) -> (i32, i32) {
    %c0_i32 = arith.constant 0 : i32
    %c0_i32_0 = arith.constant 0 : i32
    %c0_i32_1 = arith.constant 0 : i32
    return %c0_i32, %c0_i32_0 : i32, i32
  }
  func.func @transform_3(%arg0: i32, %arg1: i32) -> (i32, i32) {
    %c0_i32 = arith.constant 0 : i32
    %c0_i32_0 = arith.constant 0 : i32
    %c0_i32_1 = arith.constant 0 : i32
    return %c0_i32, %c0_i32_0 : i32, i32
  }
  func.func @transform_4(%arg0: i32, %arg1: i32) -> (i32, i32) {
    %c0_i32 = arith.constant 0 : i32
    %c0_i32_0 = arith.constant 0 : i32
    %c0_i32_1 = arith.constant 0 : i32
    return %c0_i32, %c0_i32_0 : i32, i32
  }
  func.func @transform_5(%arg0: i32, %arg1: i32) -> (i32, i32) {
    %c0_i32 = arith.constant 0 : i32
    %c0_i32_0 = arith.constant 0 : i32
    %c0_i32_1 = arith.constant 0 : i32
    return %c0_i32, %c0_i32_0 : i32, i32
  }
  func.func @transform_6(%arg0: i32, %arg1: i32) -> (i32, i32) {
    %c0_i32 = arith.constant 0 : i32
    %c0_i32_0 = arith.constant 0 : i32
    %c0_i32_1 = arith.constant 0 : i32
    return %c0_i32, %c0_i32_0 : i32, i32
  }
  func.func @transform_7(%arg0: i32, %arg1: i32) -> (i32, i32, i32) {
    %c0_i32 = arith.constant 0 : i32
    %c0_i32_0 = arith.constant 0 : i32
    return %arg0, %c0_i32, %arg1 : i32, i32, i32
  }
}

</mosaic_0001>

<llo_original>
// kernel: tpu_custom_call.1
$region0: #{tpu_custom_call.1}
  #allocation0 [shape = 'u32[]', space=smem, size = 0x4, offset = 0x4, fixed_abs, tag = 'smem constant byte address 0x4 - core index']
  #allocation1 [shape = 'u32[144,128]{1,0:T(1,128)}', space=vmem, size = 0x12000, scoped, tag = 'internal scratch']
  %s0 = inlined_call_operand.vmem [shape: f32[2,1,256], index: 0, kind: input, shape index: {}]
  %s1 = inlined_call_operand.vmem [shape: f32[4,1], index: 1, kind: input, shape index: {}]
  %s2 = inlined_call_operand.vmem [shape: f32[4,1], index: 2, kind: input, shape index: {}]
  %s3 = inlined_call_operand.vmem [shape: f32[4,4], index: 3, kind: input, shape index: {}]
  %s4 = inlined_call_operand.vmem [shape: f32[4,1], index: 4, kind: input, shape index: {}]
  %s5 = inlined_call_operand.vmem [shape: f32[8,4], index: 5, kind: input, shape index: {}]
  %s6 = inlined_call_operand.vmem [shape: f32[8,1], index: 6, kind: input, shape index: {}]
  %s7 = inlined_call_operand.hbm [shape: f32[2,8,256], index: 7, kind: output, shape index: {}]
  %s8 = sld [smem:[#allocation0]]
  $region61: #{tpu_custom_call.1} parent=0
    _
  %s10 = ssub.s32 1, %s8
  %s11 = scalar_select 0, %s10, %s8
  $region1: #{tpu_custom_call.1} parent=0
    #allocation2 [shape = 'u8[16384]{0}', space=vmem, size = 0x4000, scoped, tag = 'output window, operand 0']
    #allocation3 [shape = 's32[2]{0}', space=sflag, size = 0x8, scoped, tag = 'scoped memory for tpu_custom_call.1']
    %12 = vsyncpa [#allocation3], 0
    %s13 = scalar_lea.sflag [#allocation3], 1
    %14 = vsyncpa %s13, 0
    loop: start=0, step=1, limit=4
    $region2: #{tpu_custom_call.1} parent=1 // loop_pre_header
      _
    $region3: #{tpu_custom_call.1} parent=1 // loop_header
      %s16 = sphi 0, %s20
      %p17 = scmp.ge.s32.totalorder %s16, 4
      %s23 = sphi 0, %s35
      %s24 = sphi 0, %s31
      %s25 = sphi 0, %s23
      %s26 = sphi 0, %s24
      %s27 = sphi 0, %s25
      %s28 = sphi 0, %s26
      %s40 = sphi 0, %s42
      %s43 = sphi 0, %s40
      %s44 = sphi 0, %s43
      %s60 = sphi 0, %s44
      %s64 = sphi 0, %s64
      %s66 = sphi 0, %s64
      %s67 = sphi 0, %s66
      %s81 = sphi 0, %s67
      %s85 = sphi 0, %s85
      %s87 = sphi 0, %s85
      %s88 = sphi 0, %s87
      %s102 = sphi 0, %s88
      %s106 = sphi 0, %s106
      %s108 = sphi 0, %s106
      %s109 = sphi 0, %s108
      %s123 = sphi 0, %s109
      %s127 = sphi 0, %s127
      %s129 = sphi 0, %s127
      %s130 = sphi 0, %s129
      %s144 = sphi 0, %s130
      %s148 = sphi 0, %s148
      %s150 = sphi 0, %s148
      %s151 = sphi 0, %s150
      %s165 = sphi 0, %s151
      %s169 = sphi 0, %s169
      %s171 = sphi 0, %s169
      %s172 = sphi 0, %s171
      %s186 = sphi 0, %s172
      %s194 = sphi 0, %s196
      %s197 = sphi 0, %s194
      %s198 = sphi 0, %s197
      %s214 = sphi 0, %s198
    $region4: #{tpu_custom_call.1} parent=1 // loop_header_branch
      %19 = sbr.rel (%p17) target = $region8
    $region5: #{tpu_custom_call.1} parent=1 // loop_body
      %s21 = ssub.s32 %s16, 1
      %s22 = ssub.s32 %s16, 2
      %s29 = sadd.s32 1, %s24
      %p30 = scmp.ge.s32.totalorder %s29, 1
      %s31 = scalar_select %p30, 0, %s29
      %s32 = sadd.s32 1, %s23
      %s33 = scalar_select %p30, %s32, %s23
      %p34 = scmp.ge.s32.totalorder %s33, 2
      %s35 = scalar_select %p34, 0, %s33
      %s36 = ssub.s32 %s23, %s35
      %s37 = ssub.s32 %s24, %s31
      %s38 = sor.u32 %s36, %s37
      %p39 = scmp.eq.s32.totalorder %s38, 0
      %s41 = sadd.s32 %s40, 1
      %s42 = scalar_select %p39, %s40, %s41
      %p45 = pneg %p39
      %p46 = scmp.eq.s32.totalorder %s16, 1
      %p47 = por %p45, %p46
      %p48 = scmp.ne.s32.totalorder %s40, %s43
      %p49 = scmp.eq.s32.totalorder %s16, 0
      %p50 = por %p48, %p49
      %p51 = scmp.ne.s32.totalorder %s40, %s43
      %p52 = scmp.eq.s32.totalorder %s21, 1
      %p53 = por %p51, %p52
      %p54 = scmp.ne.s32.totalorder %s43, %s44
      %p55 = scmp.eq.s32.totalorder %s21, 0
      %p56 = por %p54, %p55
      %p57 = scmp.ne.s32.totalorder %s43, %s44
      %p58 = scmp.eq.s32.totalorder %s22, 1
      %p59 = por %p57, %p58
      %p61 = scmp.ne.s32.totalorder %s44, %s60
      %p62 = scmp.eq.s32.totalorder %s22, 0
      %p63 = por %p61, %p62
      %s65 = sadd.s32 %s64, 1
      %p68 = scmp.eq.s32.totalorder %s16, 1
      %p69 = scmp.ne.s32.totalorder %s64, %s66
      %p70 = scmp.eq.s32.totalorder %s16, 0
      %p71 = por %p69, %p70
      %p72 = scmp.ne.s32.totalorder %s64, %s66
      %p73 = scmp.eq.s32.totalorder %s21, 1
      %p74 = por %p72, %p73
      %p75 = scmp.ne.s32.totalorder %s66, %s67
      %p76 = scmp.eq.s32.totalorder %s21, 0
      %p77 = por %p75, %p76
      %p78 = scmp.ne.s32.totalorder %s66, %s67
      %p79 = scmp.eq.s32.totalorder %s22, 1
      %p80 = por %p78, %p79
      %p82 = scmp.ne.s32.totalorder %s67, %s81
      %p83 = scmp.eq.s32.totalorder %s22, 0
      %p84 = por %p82, %p83
      %s86 = sadd.s32 %s85, 1
      %p89 = scmp.eq.s32.totalorder %s16, 1
      %p90 = scmp.ne.s32.totalorder %s85, %s87
      %p91 = scmp.eq.s32.totalorder %s16, 0
      %p92 = por %p90, %p91
      %p93 = scmp.ne.s32.totalorder %s85, %s87
      %p94 = scmp.eq.s32.totalorder %s21, 1
      %p95 = por %p93, %p94
      %p96 = scmp.ne.s32.totalorder %s87, %s88
      %p97 = scmp.eq.s32.totalorder %s21, 0
      %p98 = por %p96, %p97
      %p99 = scmp.ne.s32.totalorder %s87, %s88
      %p100 = scmp.eq.s32.totalorder %s22, 1
      %p101 = por %p99, %p100
      %p103 = scmp.ne.s32.totalorder %s88, %s102
      %p104 = scmp.eq.s32.totalorder %s22, 0
      %p105 = por %p103, %p104
      %s107 = sadd.s32 %s106, 1
      %p110 = scmp.eq.s32.totalorder %s16, 1
      %p111 = scmp.ne.s32.totalorder %s106, %s108
      %p112 = scmp.eq.s32.totalorder %s16, 0
      %p113 = por %p111, %p112
      %p114 = scmp.ne.s32.totalorder %s106, %s108
      %p115 = scmp.eq.s32.totalorder %s21, 1
      %p116 = por %p114, %p115
      %p117 = scmp.ne.s32.totalorder %s108, %s109
      %p118 = scmp.eq.s32.totalorder %s21, 0
      %p119 = por %p117, %p118
      %p120 = scmp.ne.s32.totalorder %s108, %s109
      %p121 = scmp.eq.s32.totalorder %s22, 1
      %p122 = por %p120, %p121
      %p124 = scmp.ne.s32.totalorder %s109, %s123
      %p125 = scmp.eq.s32.totalorder %s22, 0
      %p126 = por %p124, %p125
      %s128 = sadd.s32 %s127, 1
      %p131 = scmp.eq.s32.totalorder %s16, 1
      %p132 = scmp.ne.s32.totalorder %s127, %s129
      %p133 = scmp.eq.s32.totalorder %s16, 0
      %p134 = por %p132, %p133
      %p135 = scmp.ne.s32.totalorder %s127, %s129
      %p136 = scmp.eq.s32.totalorder %s21, 1
      %p137 = por %p135, %p136
      %p138 = scmp.ne.s32.totalorder %s129, %s130
      %p139 = scmp.eq.s32.totalorder %s21, 0
      %p140 = por %p138, %p139
      %p141 = scmp.ne.s32.totalorder %s129, %s130
      %p142 = scmp.eq.s32.totalorder %s22, 1
      %p143 = por %p141, %p142
      %p145 = scmp.ne.s32.totalorder %s130, %s144
      %p146 = scmp.eq.s32.totalorder %s22, 0
      %p147 = por %p145, %p146
      %s149 = sadd.s32 %s148, 1
      %p152 = scmp.eq.s32.totalorder %s16, 1
      %p153 = scmp.ne.s32.totalorder %s148, %s150
      %p154 = scmp.eq.s32.totalorder %s16, 0
      %p155 = por %p153, %p154
      %p156 = scmp.ne.s32.totalorder %s148, %s150
      %p157 = scmp.eq.s32.totalorder %s21, 1
      %p158 = por %p156, %p157
      %p159 = scmp.ne.s32.totalorder %s150, %s151
      %p160 = scmp.eq.s32.totalorder %s21, 0
      %p161 = por %p159, %p160
      %p162 = scmp.ne.s32.totalorder %s150, %s151
      %p163 = scmp.eq.s32.totalorder %s22, 1
      %p164 = por %p162, %p163
      %p166 = scmp.ne.s32.totalorder %s151, %s165
      %p167 = scmp.eq.s32.totalorder %s22, 0
      %p168 = por %p166, %p167
      %s170 = sadd.s32 %s169, 1
      %p173 = scmp.eq.s32.totalorder %s16, 1
      %p174 = scmp.ne.s32.totalorder %s169, %s171
      %p175 = scmp.eq.s32.totalorder %s16, 0
      %p176 = por %p174, %p175
      %p177 = scmp.ne.s32.totalorder %s169, %s171
      %p178 = scmp.eq.s32.totalorder %s21, 1
      %p179 = por %p177, %p178
      %p180 = scmp.ne.s32.totalorder %s171, %s172
      %p181 = scmp.eq.s32.totalorder %s21, 0
      %p182 = por %p180, %p181
      %p183 = scmp.ne.s32.totalorder %s171, %s172
      %p184 = scmp.eq.s32.totalorder %s22, 1
      %p185 = por %p183, %p184
      %p187 = scmp.ne.s32.totalorder %s172, %s186
      %p188 = scmp.eq.s32.totalorder %s22, 0
      %p189 = por %p187, %p188
      %s190 = ssub.s32 %s23, %s35
      %s191 = ssub.s32 %s24, %s31
      %s192 = sor.u32 %s190, %s191
      %p193 = scmp.eq.s32.totalorder %s192, 0
      %s195 = sadd.s32 %s194, 1
      %s196 = scalar_select %p193, %s194, %s195
      %p199 = pneg %p193
      %p200 = scmp.eq.s32.totalorder %s16, 1
      %p201 = por %p199, %p200
      %p202 = scmp.ne.s32.totalorder %s194, %s197
      %p203 = scmp.eq.s32.totalorder %s16, 0
      %p204 = por %p202, %p203
      %p205 = scmp.ne.s32.totalorder %s194, %s197
      %p206 = scmp.eq.s32.totalorder %s21, 1
      %p207 = por %p205, %p206
      %p208 = scmp.ne.s32.totalorder %s197, %s198
      %p209 = scmp.eq.s32.totalorder %s21, 0
      %p210 = por %p208, %p209
      %p211 = scmp.ne.s32.totalorder %s197, %s198
      %p212 = scmp.eq.s32.totalorder %s22, 1
      %p213 = por %p211, %p212
      %p215 = scmp.ne.s32.totalorder %s198, %s214
      %p216 = scmp.eq.s32.totalorder %s22, 0
      %p217 = por %p215, %p216
      %p218 = scmp.le.s32.totalorder 1, %s16
      %p219 = scmp.lt.s32.totalorder %s16, 3
      %p220 = pnand %p218, %p219
      %p221 = pneg %p220
      // Predicated region
      $region9: #{tpu_custom_call.1} parent=5 // pred_check
        _
      $region10: #{tpu_custom_call.1} parent=5 // pred_check_branch
        %223 = sbr.rel (%p220) target = $region12
      $region11: #{tpu_custom_call.1} parent=5 // pred_region
        %s224 = ssub.s32 %s16, 1
        // Predicated region
        $region13: #{tpu_custom_call.1} parent=11 // pred_check
          %p225 = pneg %p77
        $region14: #{tpu_custom_call.1} parent=11 // pred_check_branch
          %227 = sbr.rel (%p225) target = $region16
        $region15: #{tpu_custom_call.1} parent=11 // pred_region
          _
        $region16: #{tpu_custom_call.1} parent=11 // pred_fallthru
          _
        // Predicated region
        $region17: #{tpu_custom_call.1} parent=11 // pred_check
          %p228 = pneg %p98
        $region18: #{tpu_custom_call.1} parent=11 // pred_check_branch
          %230 = sbr.rel (%p228) target = $region20
        $region19: #{tpu_custom_call.1} parent=11 // pred_region
          _
        $region20: #{tpu_custom_call.1} parent=11 // pred_fallthru
          _
        // Predicated region
        $region21: #{tpu_custom_call.1} parent=11 // pred_check
          %p231 = pneg %p119
        $region22: #{tpu_custom_call.1} parent=11 // pred_check_branch
          %233 = sbr.rel (%p231) target = $region24
        $region23: #{tpu_custom_call.1} parent=11 // pred_region
          _
        $region24: #{tpu_custom_call.1} parent=11 // pred_fallthru
          _
        // Predicated region
        $region25: #{tpu_custom_call.1} parent=11 // pred_check
          %p234 = pneg %p140
        $region26: #{tpu_custom_call.1} parent=11 // pred_check_branch
          %236 = sbr.rel (%p234) target = $region28
        $region27: #{tpu_custom_call.1} parent=11 // pred_region
          _
        $region28: #{tpu_custom_call.1} parent=11 // pred_fallthru
          _
        // Predicated region
        $region29: #{tpu_custom_call.1} parent=11 // pred_check
          %p237 = pneg %p161
        $region30: #{tpu_custom_call.1} parent=11 // pred_check_branch
          %239 = sbr.rel (%p237) target = $region32
        $region31: #{tpu_custom_call.1} parent=11 // pred_region
          _
        $region32: #{tpu_custom_call.1} parent=11 // pred_fallthru
          _
        // Predicated region
        $region33: #{tpu_custom_call.1} parent=11 // pred_check
          %p240 = pneg %p182
        $region34: #{tpu_custom_call.1} parent=11 // pred_check_branch
          %242 = sbr.rel (%p240) target = $region36
        $region35: #{tpu_custom_call.1} parent=11 // pred_region
          _
        $region36: #{tpu_custom_call.1} parent=11 // pred_fallthru
          _
      $region12: #{tpu_custom_call.1} parent=5 // pred_fallthru
        _
      %p243 = scmp.lt.s32.totalorder %s16, 2
      // Predicated region
      $region37: #{tpu_custom_call.1} parent=5 // pred_check
        %p244 = pneg %p243
      $region38: #{tpu_custom_call.1} parent=5 // pred_check_branch
        %246 = sbr.rel (%p244) target = $region40
      $region39: #{tpu_custom_call.1} parent=5 // pred_region
        // Predicated region
        $region41: #{tpu_custom_call.1} parent=39 // pred_check
          %p247 = pneg %p50
        $region42: #{tpu_custom_call.1} parent=39 // pred_check_branch
          %249 = sbr.rel (%p247) target = $region44
        $region43: #{tpu_custom_call.1} parent=39 // pred_region
          %s250 = smul.u32 2, %s24
          %p251 = scmp.lt.s32.totalorder %s23, 1
          %s252 = scalar_select %p251, %s23, 1
          %p253 = scmp.lt.s32.totalorder %s250, 1
          %s254 = scalar_select %p253, %s250, 1
          %s255 = smul.addr %s252, 2
          %s256 = sadd.s32 %s254, %s255
          %s257 = scalar_lea.vmem %s0, %s256
          %s258 = smul.u32 2, %s24
        $region44: #{tpu_custom_call.1} parent=39 // pred_fallthru
          _
      $region40: #{tpu_custom_call.1} parent=5 // pred_fallthru
        _
      %p259 = scmp.le.s32.totalorder 1, %s16
      %p260 = scmp.lt.s32.totalorder %s16, 3
      %p261 = pnand %p259, %p260
      %p262 = pneg %p261
      // Predicated region
      $region45: #{tpu_custom_call.1} parent=5 // pred_check
        _
      $region46: #{tpu_custom_call.1} parent=5 // pred_check_branch
        %264 = sbr.rel (%p261) target = $region48
      $region47: #{tpu_custom_call.1} parent=5 // pred_region
        %s265 = ssub.s32 %s16, 1
        %s266 = smul.u32 2, %s26
        %p267 = scmp.lt.s32.totalorder %s25, 1
        %s268 = scalar_select %p267, %s25, 1
        %p269 = scmp.lt.s32.totalorder %s266, 1
        %s270 = scalar_select %p269, %s266, 1
        %s271 = smul.addr %s268, 2
        %s272 = sadd.s32 %s270, %s271
        %s273 = scalar_lea.vmem %s0, %s272
        %p274 = pneg %p56
        %p275 = pneg %p53
        %p276 = pneg %p77
        %p277 = pneg %p74
        %p278 = pneg %p98
        %p279 = pneg %p95
        %p280 = pneg %p119
        %p281 = pneg %p116
        %p282 = pneg %p140
        %p283 = pneg %p137
        %p284 = pneg %p161
        %p285 = pneg %p158
        %p286 = pneg %p182
        %p287 = pneg %p179
        %p288 = pneg %p210
        %p289 = pneg %p207
        %s290 = sand.u32 %s197, 1
        %s291 = scalar_lea.sflag [#allocation3], %s290
        %s292 = sand.u32 %s197, 1
        %s293 = smul.addr %s292, 16
        %s294 = scalar_lea.vmem [#allocation2], %s293
        %s295 = smul.u32 2, %s26
        %p296 = scmp.lt.s32.totalorder %s25, 1
        %s297 = scalar_select %p296, %s25, 1
        %p298 = scmp.lt.s32.totalorder %s295, 1
        %s299 = scalar_select %p298, %s295, 1
        %s300 = smul.addr %s297, 2
        %s301 = sadd.s32 %s299, %s300
        %s302 = scalar_lea.vmem %s0, %s301
        %s303 = smul.u32 2, %s26
        %s304 = smul.u32 2, %s26
        %v305 = vld [vmem:[%s302] sm:$0x3]
        %v306 = vld [vmem:[%s1] sm:$0xf]
        %308 = vset.pattern.permute.xlu0 0
        %309 = vperm.xlu0 %308, %v306
        %v310 = vpop.permute.xlu0 %309
        %v313 = vlaneseq
        %v314 = vshrl.u32 %v313, 7
        %v315 = vsub.s32 0, %v314
        %v316 = vrot.slane %v305, %v315
        %v317 = vlaneseq
        %v318 = vshrl.u32 %v317, 7
        %v319 = vsub.s32 1, %v318
        %v320 = vrot.slane %v305, %v319
        %v323 = vmul.f32 %v310, %v316
        %v324 = vmul.f32 %v310, %v320
        %v325 = vld [vmem:[%s2] sm:$0xf]
        %327 = vset.pattern.permute.xlu0 0
        %328 = vperm.xlu0 %327, %v325
        %v329 = vpop.permute.xlu0 %328
        %v331 = vadd.f32 %v323, %v329
        %v332 = vadd.f32 %v324, %v329
        %v333 = vmax.f32 %v331, 0.0
        %v334 = vmax.f32 %v332, 0.0
        %v335 = vld [vmem:[%s3] sm:$0xf]
        %v336 = vld [vmem:[%s4] sm:$0xf]
        %338 = vset.pattern.permute.xlu0 0
        %339 = vperm.xlu0 %338, %v335
        %v340 = vpop.permute.xlu0 %339
        %v342 = vlaneseq
        %v343 = vshrl.u32 %v342, 7
        %v344 = vsub.s32 0, %v343
        %v345 = vrot.slane %v333, %v344
        %v346 = vlaneseq
        %v347 = vshrl.u32 %v346, 7
        %v348 = vsub.s32 0, %v347
        %v349 = vrot.slane %v334, %v348
        %v350 = vmul.f32 %v340, %v345
        %v351 = vmul.f32 %v340, %v349
        %353 = vset.pattern.permute.xlu0 0
        %354 = vperm.xlu0 %353, %v336
        %v355 = vpop.permute.xlu0 %354
        %v357 = vadd.f32 %v355, %v350
        %v358 = vadd.f32 %v355, %v351
        %359 = vset.pattern.permute.xlu0 1
        %360 = vperm.xlu0 %359, %v335
        %v361 = vpop.permute.xlu0 %360
        %v363 = vlaneseq
        %v364 = vshrl.u32 %v363, 7
        %v365 = vsub.s32 1, %v364
        %v366 = vrot.slane %v333, %v365
        %v367 = vlaneseq
        %v368 = vshrl.u32 %v367, 7
        %v369 = vsub.s32 1, %v368
        %v370 = vrot.slane %v334, %v369
        %v371 = vmul.f32 %v361, %v366
        %v372 = vmul.f32 %v361, %v370
        %v373 = vadd.f32 %v357, %v371
        %v374 = vadd.f32 %v358, %v372
        %375 = vset.pattern.permute.xlu0 2
        %376 = vperm.xlu0 %375, %v335
        %v377 = vpop.permute.xlu0 %376
        %v379 = vlaneseq
        %v380 = vshrl.u32 %v379, 7
        %v381 = vsub.s32 2, %v380
        %v382 = vrot.slane %v333, %v381
        %v383 = vlaneseq
        %v384 = vshrl.u32 %v383, 7
        %v385 = vsub.s32 2, %v384
        %v386 = vrot.slane %v334, %v385
        %v387 = vmul.f32 %v377, %v382
        %v388 = vmul.f32 %v377, %v386
        %v389 = vadd.f32 %v373, %v387
        %v390 = vadd.f32 %v374, %v388
        %391 = vset.pattern.permute.xlu0 3
        %392 = vperm.xlu0 %391, %v335
        %v393 = vpop.permute.xlu0 %392
        %v395 = vlaneseq
        %v396 = vshrl.u32 %v395, 7
        %v397 = vsub.s32 3, %v396
        %v398 = vrot.slane %v333, %v397
        %v399 = vlaneseq
        %v400 = vshrl.u32 %v399, 7
        %v401 = vsub.s32 3, %v400
        %v402 = vrot.slane %v334, %v401
        %v403 = vmul.f32 %v393, %v398
        %v404 = vmul.f32 %v393, %v402
        %v405 = vadd.f32 %v389, %v403
        %v406 = vadd.f32 %v390, %v404
        %v407 = vxor.u32 %v405, 2147483648
        %v408 = vxor.u32 %v406, 2147483648
        %v409 = vmul.f32 %v407, 1.442695
        %v410 = vpow.pop %v409
        %v411 = vmul.f32 %v408, 1.442695
        %v412 = vpow.pop %v411
        %v413 = vadd.f32 %v410, 1.0
        %v414 = vadd.f32 %v412, 1.0
        %v415 = vrcp.pop %v413
        %v416 = vmul.f32 1.0, %v415
        %v417 = vrcp.pop %v414
        %v418 = vmul.f32 1.0, %v417
        %v419 = vmul.f32 %v316, %v416
        %v420 = vmul.f32 %v320, %v418
        %v421 = vld [vmem:[%s5] sm:$0xff]
        %v422 = vld [vmem:[%s6] sm:$0xff]
        %424 = vset.pattern.permute.xlu0 0
        %425 = vperm.xlu0 %424, %v421
        %v426 = vpop.permute.xlu0 %425
        %v428 = vlaneseq
        %v429 = vshrl.u32 %v428, 7
        %v430 = vsub.s32 0, %v429
        %v431 = vrot.slane %v419, %v430
        %v432 = vlaneseq
        %v433 = vshrl.u32 %v432, 7
        %v434 = vsub.s32 0, %v433
        %v435 = vrot.slane %v420, %v434
        %v436 = vmul.f32 %v426, %v431
        %v437 = vmul.f32 %v426, %v435
        %439 = vset.pattern.permute.xlu0 0
        %440 = vperm.xlu0 %439, %v422
        %v441 = vpop.permute.xlu0 %440
        %v443 = vadd.f32 %v441, %v436
        %v444 = vadd.f32 %v441, %v437
        %445 = vset.pattern.permute.xlu0 1
        %446 = vperm.xlu0 %445, %v421
        %v447 = vpop.permute.xlu0 %446
        %v449 = vlaneseq
        %v450 = vshrl.u32 %v449, 7
        %v451 = vsub.s32 1, %v450
        %v452 = vrot.slane %v419, %v451
        %v453 = vlaneseq
        %v454 = vshrl.u32 %v453, 7
        %v455 = vsub.s32 1, %v454
        %v456 = vrot.slane %v420, %v455
        %v457 = vmul.f32 %v447, %v452
        %v458 = vmul.f32 %v447, %v456
        %v459 = vadd.f32 %v443, %v457
        %v460 = vadd.f32 %v444, %v458
        %461 = vset.pattern.permute.xlu0 2
        %462 = vperm.xlu0 %461, %v421
        %v463 = vpop.permute.xlu0 %462
        %v465 = vlaneseq
        %v466 = vshrl.u32 %v465, 7
        %v467 = vsub.s32 2, %v466
        %v468 = vrot.slane %v419, %v467
        %v469 = vlaneseq
        %v470 = vshrl.u32 %v469, 7
        %v471 = vsub.s32 2, %v470
        %v472 = vrot.slane %v420, %v471
        %v473 = vmul.f32 %v463, %v468
        %v474 = vmul.f32 %v463, %v472
        %v475 = vadd.f32 %v459, %v473
        %v476 = vadd.f32 %v460, %v474
        %477 = vset.pattern.permute.xlu0 3
        %478 = vperm.xlu0 %477, %v421
        %v479 = vpop.permute.xlu0 %478
        %v481 = vlaneseq
        %v482 = vshrl.u32 %v481, 7
        %v483 = vsub.s32 3, %v482
        %v484 = vrot.slane %v419, %v483
        %v485 = vlaneseq
        %v486 = vshrl.u32 %v485, 7
        %v487 = vsub.s32 3, %v486
        %v488 = vrot.slane %v420, %v487
        %v489 = vmul.f32 %v479, %v484
        %v490 = vmul.f32 %v479, %v488
        %v491 = vadd.f32 %v475, %v489
        %v492 = vadd.f32 %v476, %v490
        %493 = vst [vmem:[%s294] sm:$0xff] %v491
        %494 = vst [vmem:[%s294 + $0x8] sm:$0xff] %v492
        %s495 = sand.u32 %s197, 1
        %s496 = scalar_lea.sflag [#allocation3], %s495
        %s497 = sand.u32 %s197, 1
        %s498 = smul.addr %s497, 16
        %s499 = scalar_lea.vmem [#allocation2], %s498
        // Predicated region
        $region49: #{tpu_custom_call.1} parent=47 // pred_check
          %p500 = pneg %p207
        $region50: #{tpu_custom_call.1} parent=47 // pred_check_branch
          %502 = sbr.rel (%p500) target = $region52
        $region51: #{tpu_custom_call.1} parent=47 // pred_region
          %s503 = smul.u32 2, %s26
          %s505 = ssub.s32 256, 256
          %506 = vsyncadd %s496, %s505
          %s507 = smul.addr %s25, 2
          %s508 = sadd.s32 %s503, %s507
          %s509 = smul.addr %s508, 128
          %s510 = scalar_lea.hbm %s7, %s509
          %s512 = sshll.u32 %s499, 4
          %s513 = int_to_ptr.vmem [resolvable:$true] %s512
          %515 = dma.vmem_to_hbm [thread:$0]  %s513, 256, %s510, %s496
        $region52: #{tpu_custom_call.1} parent=47 // pred_fallthru
          _
      $region48: #{tpu_custom_call.1} parent=5 // pred_fallthru
        _
      %p516 = scmp.le.s32.totalorder 2, %s16
      // Predicated region
      $region53: #{tpu_custom_call.1} parent=5 // pred_check
        %p517 = pneg %p516
      $region54: #{tpu_custom_call.1} parent=5 // pred_check_branch
        %519 = sbr.rel (%p517) target = $region56
      $region55: #{tpu_custom_call.1} parent=5 // pred_region
        %s520 = ssub.s32 %s16, 2
        // Predicated region
        $region57: #{tpu_custom_call.1} parent=55 // pred_check
          %p521 = pneg %p213
        $region58: #{tpu_custom_call.1} parent=55 // pred_check_branch
          %523 = sbr.rel (%p521) target = $region60
        $region59: #{tpu_custom_call.1} parent=55 // pred_region
          %s524 = sand.u32 %s198, 1
          %s525 = scalar_lea.sflag [#allocation3], %s524
          %s526 = sand.u32 %s198, 1
          %s527 = smul.addr %s526, 16
          %s528 = scalar_lea.vmem [#allocation2], %s527
          %529 = dma.done %s525, 256
        $region60: #{tpu_custom_call.1} parent=55 // pred_fallthru
          _
      $region56: #{tpu_custom_call.1} parent=5 // pred_fallthru
        _
    $region6: #{tpu_custom_call.1} parent=1 // loop_footer
      %s20 = sadd.s32 1, %s16
    $region7: #{tpu_custom_call.1} parent=1 // loop_footer_branch
      %15 = sbr.rel target = $region3
    $region8: #{tpu_custom_call.1} parent=1 // loop_exit
      _
    %530 = vsyncpa [#allocation3], 1
    %s531 = scalar_lea.sflag [#allocation3], 1
    %532 = vsyncpa %s531, 1

</llo_original>
